<compile_context>
chip_gen: v5e
topology: v5e:2x2
jax: 0.10.0
libtpu: 0.0.40
codegen_flags: <defaults>
</compile_context>

<pallas_src>
import functools

import jax
import jax.numpy as jnp
from jax.experimental import pallas as pl
from jax.experimental.pallas import tpu as pltpu

IN_DIM = 2 * 14 * 14    # 392 -- fed unpadded; full-array last dim is a legal block
H1_PAD = 256            # 100 + 100 -> 256
H2_PAD = 128            # 50 + 50   -> 128
HEAD_PAD = 128          # width of the merged output slab / fc5 slab
HEAD2_PAD = 256         # width of the fused fc3|fc4 head
COMMON_COL = 20         # column of the merged slab holding sigmoid(fc5)


def _round_up(n, m):
    return (n + m - 1) // m * m


def _fwd_kernel(x_ref,
                w1_ref, b1_ref,
                w2_ref, b2_ref,
                w34_ref, b34_ref,
                w5_ref, b5_ref,
                out_ref, tmax_ref, tsum_ref,
                *, valid_rows, block_m):
    # x: (bm, 392) f32; weights bf16; biases f32 (1, out_pad).
    x = x_ref[...].astype(jnp.bfloat16)

    h1 = jnp.dot(x, w1_ref[...], preferred_element_type=jnp.float32) + b1_ref[...]
    h1 = jnp.maximum(h1, 0.0)                               # (bm,256) = [im1_100|im2_100|pad]

    h2 = jnp.dot(h1.astype(jnp.bfloat16), w2_ref[...],
                 preferred_element_type=jnp.float32) + b2_ref[...]
    h2 = jnp.maximum(h2, 0.0)                               # (bm,128) = [im1_50|im2_50|pad]
    h2b = h2.astype(jnp.bfloat16)

    # Fused heads: one (128,256) matmul; cols 0:128 = fc3_im1|fc3_im2 logits,
    # cols 128:256 = fc4.
    head = jnp.dot(h2b, w34_ref[...], preferred_element_type=jnp.float32) + b34_ref[...]
    aux = head[:, 0:HEAD_PAD]                               # fc3 logits in cols 0:20
    c = jnp.maximum(head[:, HEAD_PAD:HEAD2_PAD], 0.0)       # relu(fc4), real cols 0:10

    # fc5 is packed so its single output lands in column COMMON_COL of a 128-slab.
    logit = jnp.dot(c.astype(jnp.bfloat16), w5_ref[...],
                    preferred_element_type=jnp.float32) + b5_ref[...]
    sig = 1.0 / (1.0 + jnp.exp(-logit))                     # exact sigmoid (mem-bound kernel)

    # Single merged writeback: aux logits in cols 0:20, sigmoid(common) in col 20.
    col = jax.lax.broadcasted_iota(jnp.int32, aux.shape, 1)
    out_ref[...] = jnp.where(col == COMMON_COL, sig, aux)

    # Per-tile partials for the batch-dim softmax (F.softmax(..., dim=0)):
    # per-column max and sum-exp over the *valid* rows of this tile.
    row = jax.lax.broadcasted_iota(jnp.int32, aux.shape, 0) + pl.program_id(0) * block_m
    zm = jnp.where(row < valid_rows, aux, jnp.float32(-1e30))
    m = jnp.max(zm, axis=0, keepdims=True)                  # (1,128)
    tmax_ref[...] = m
    tsum_ref[...] = jnp.sum(jnp.exp(zm - m), axis=0, keepdims=True)


def _softmax_norm_kernel(z_ref, tmax_ref, tsum_ref, o_ref):
    # Combine per-tile partials (tiny, resident) and normalize this batch tile.
    m_all = tmax_ref[...]                                   # (n_tiles, 128)
    gmax = jnp.max(m_all, axis=0, keepdims=True)            # (1, 128)
    gsum = jnp.sum(jnp.exp(m_all - gmax) * tsum_ref[...], axis=0, keepdims=True)
    o_ref[...] = jnp.exp(z_ref[...] - gmax) / gsum          # exact division


def init_params(key):
    """PyTorch nn.Linear-style init: W (out, in), b (out,), U(-1/sqrt(in), 1/sqrt(in))."""
    layer_dims = {
        "fc1_im1": (196, 100), "fc1_im2": (196, 100),
        "fc2_im1": (100, 50), "fc2_im2": (100, 50),
        "fc3_im1": (50, 10), "fc3_im2": (50, 10),
        "fc4": (100, 10), "fc5": (10, 1),
    }
    params = {}
    for name, (fan_in, fan_out) in layer_dims.items():
        key, kw, kb = jax.random.split(key, 3)
        bound = 1.0 / (fan_in ** 0.5)
        w = jax.random.uniform(kw, (fan_out, fan_in), jnp.float32, -bound, bound)
        b = jax.random.uniform(kb, (fan_out,), jnp.float32, -bound, bound)
        params[name] = (w, b)
    return params


def pack_params(params):
    """Fuse branches into block-diagonal (in, out) matrices; cast weights to bf16 once."""
    def wt(name):
        return params[name][0].T          # (in, out)

    def bb(name):
        return params[name][1]

    # fc1: block-diagonal over the two image branches; K kept at 392 (no input padding).
    w1 = jnp.zeros((IN_DIM, H1_PAD), jnp.float32)
    w1 = w1.at[0:196, 0:100].set(wt("fc1_im1")).at[196:392, 100:200].set(wt("fc1_im2"))
    b1 = jnp.zeros((1, H1_PAD), jnp.float32)
    b1 = b1.at[0, 0:100].set(bb("fc1_im1")).at[0, 100:200].set(bb("fc1_im2"))

    w2 = jnp.zeros((H1_PAD, H2_PAD), jnp.float32)
    w2 = w2.at[0:100, 0:50].set(wt("fc2_im1")).at[100:200, 50:100].set(wt("fc2_im2"))
    b2 = jnp.zeros((1, H2_PAD), jnp.float32)
    b2 = b2.at[0, 0:50].set(bb("fc2_im1")).at[0, 50:100].set(bb("fc2_im2"))

    # fc3 (both branches) and fc4 fused into a single (128, 256) head weight.
    w34 = jnp.zeros((H2_PAD, HEAD2_PAD), jnp.float32)
    w34 = w34.at[0:50, 0:10].set(wt("fc3_im1")).at[50:100, 10:20].set(wt("fc3_im2"))
    w34 = w34.at[0:100, 128:138].set(wt("fc4"))
    b34 = jnp.zeros((1, HEAD2_PAD), jnp.float32)
    b34 = b34.at[0, 0:10].set(bb("fc3_im1")).at[0, 10:20].set(bb("fc3_im2"))
    b34 = b34.at[0, 128:138].set(bb("fc4"))

    # fc5 packed so its single output lands in column COMMON_COL.
    w5 = jnp.zeros((HEAD_PAD, HEAD_PAD), jnp.float32)
    w5 = w5.at[0:10, COMMON_COL:COMMON_COL + 1].set(wt("fc5"))
    b5 = jnp.zeros((1, HEAD_PAD), jnp.float32).at[0, COMMON_COL].set(bb("fc5")[0])

    return (w1.astype(jnp.bfloat16), b1,
            w2.astype(jnp.bfloat16), b2,
            w34.astype(jnp.bfloat16), b34,
            w5.astype(jnp.bfloat16), b5)


def fully_dense_net_aux_forward(x, packed, *, block_m=1024):
    """x: (B, 2, 14, 14) float32. Returns (common (B,1), im1 (B,10), im2 (B,10)).

    block_m=1024 fits the default scoped-VMEM limit on v5e/v6e/v7x; on v6e/v7x
    block_m=2048 also fits (32 MiB default). For larger tiles add
    pltpu.CompilerParams(vmem_limit_bytes=...).
    """
    w1, b1, w2, b2, w34, b34, w5, b5 = packed
    B = x.shape[0]
    x_flat = x.reshape(B, IN_DIM)               # = [flatten(im1) | flatten(im2)], no copy

    # Batch tiling: multiple of 8 sublanes; keep >=4 grid steps when B allows it so
    # the "parallel" axis shards over both v7x TensorCores and still pipelines.
    b8 = _round_up(max(B, 8), 8)
    bm = max(8, min(block_m, _round_up(pl.cdiv(b8, 4), 8), b8))
    b_pad = _round_up(b8, bm)
    n_tiles = b_pad // bm

    if b_pad != B:
        # TODO(synk): only the (b_pad - B) tail rows need zero-fill; choose B as a
        # multiple of the tile upstream to skip this copy entirely.
        x_in = jnp.zeros((b_pad, IN_DIM), x_flat.dtype).at[:B].set(x_flat)
    else:
        x_in = x_flat

    def resident(shape):                        # stays in VMEM across the whole grid
        return pl.BlockSpec(shape, lambda i: (0, 0))
    # TODO(synk): on v5e, pipeline_mode=pl.Buffered(1) on resident weight specs would
    # reclaim ~0.4 MiB of needless double-buffering.

    def row_spec(width):                        # batch-tiled, lane-dense
        return pl.BlockSpec((bm, width), lambda i: (i, 0))

    kernel = functools.partial(_fwd_kernel, valid_rows=B, block_m=bm)
    merged, tmax, tsum = pl.pallas_call(
        kernel,
        out_shape=(jax.ShapeDtypeStruct((b_pad, HEAD_PAD), jnp.float32),
                   jax.ShapeDtypeStruct((n_tiles, HEAD_PAD), jnp.float32),
                   jax.ShapeDtypeStruct((n_tiles, HEAD_PAD), jnp.float32)),
        grid=(n_tiles,),
        in_specs=[row_spec(IN_DIM),
                  resident((IN_DIM, H1_PAD)), resident((1, H1_PAD)),
                  resident((H1_PAD, H2_PAD)), resident((1, H2_PAD)),
                  resident((H2_PAD, HEAD2_PAD)), resident((1, HEAD2_PAD)),
                  resident((HEAD_PAD, HEAD_PAD)), resident((1, HEAD_PAD))],
        out_specs=(row_spec(HEAD_PAD),
                   pl.BlockSpec((1, HEAD_PAD), lambda i: (i, 0)),
                   pl.BlockSpec((1, HEAD_PAD), lambda i: (i, 0))),
        compiler_params=pltpu.CompilerParams(dimension_semantics=("parallel",)),
    )(x_in, w1, b1, w2, b2, w34, b34, w5, b5)

    # Batch-dim softmax normalization (F.softmax(..., dim=0)): combine per-tile
    # (max, sum-exp) partials and normalize, tiled over batch -> no VMEM ceiling.
    aux_soft = pl.pallas_call(
        _softmax_norm_kernel,
        out_shape=jax.ShapeDtypeStruct((b_pad, HEAD_PAD), jnp.float32),
        grid=(n_tiles,),
        in_specs=[row_spec(HEAD_PAD),
                  resident((n_tiles, HEAD_PAD)),
                  resident((n_tiles, HEAD_PAD))],
        out_specs=row_spec(HEAD_PAD),
        compiler_params=pltpu.CompilerParams(dimension_semantics=("parallel",)),
    )(merged, tmax, tsum)

    common = merged[:B, COMMON_COL:COMMON_COL + 1]
    im1 = aux_soft[:B, 0:10]
    im2 = aux_soft[:B, 10:20]
    return common, im1, im2


def _reference(x, params):
    """Pure-JAX f32 reference with the exact PyTorch semantics."""
    B = x.shape[0]
    im1 = x[:, 0].reshape(B, -1)
    im2 = x[:, 1].reshape(B, -1)

    def lin(h, name):
        w, b = params[name]
        return h @ w.T + b

    h1a = jnp.maximum(lin(im1, "fc1_im1"), 0.0)
    h1b = jnp.maximum(lin(im2, "fc1_im2"), 0.0)
    h2a = jnp.maximum(lin(h1a, "fc2_im1"), 0.0)
    h2b = jnp.maximum(lin(h1b, "fc2_im2"), 0.0)
    common = jnp.concatenate([h2a, h2b], axis=1)
    common = jnp.maximum(lin(common, "fc4"), 0.0)
    common = jax.nn.sigmoid(lin(common, "fc5"))
    a1 = jax.nn.softmax(lin(h2a, "fc3_im1"), axis=0)
    a2 = jax.nn.softmax(lin(h2b, "fc3_im2"), axis=0)
    return common, a1, a2


if __name__ == "__main__":
    key = jax.random.PRNGKey(0)
    k_x, k_p = jax.random.split(key)

    B = 8
    x = jax.random.normal(k_x, (B, 2, 14, 14), dtype=jnp.float32)
    raw_params = init_params(k_p)
    packed = pack_params(raw_params)

    common, im1, im2 = fully_dense_net_aux_forward(x, packed)
    jax.block_until_ready((common, im1, im2))

    assert common.shape == (B, 1)
    assert im1.shape == (B, 10) and im2.shape == (B, 10)
    assert bool(jnp.all((common >= 0.0) & (common <= 1.0)))
    # F.softmax(dim=0): every column sums to ~1 (exact division used in-kernel).
    assert bool(jnp.allclose(im1.sum(axis=0), 1.0, atol=1e-3))
    assert bool(jnp.allclose(im2.sum(axis=0), 1.0, atol=1e-3))

    ref_common, ref_im1, ref_im2 = _reference(x, raw_params)
    # bf16 matmuls with f32 accumulation vs full-f32 reference -> loose-ish tol.
    assert bool(jnp.allclose(common, ref_common, atol=2e-2))
    assert bool(jnp.allclose(im1, ref_im1, atol=2e-2))
    assert bool(jnp.allclose(im2, ref_im2, atol=2e-2))

    print("KERNEL_OK")
</pallas_src>

<mosaic_0001>
module attributes {stable_mosaic.version = 11 : i64} {
  func.func @_fwd_kernel(%arg0: i32, %arg1: memref<8x392xf32, #tpu.memory_space<vmem>>, %arg2: memref<392x256xbf16, #tpu.memory_space<vmem>>, %arg3: memref<1x256xf32, #tpu.memory_space<vmem>>, %arg4: memref<256x128xbf16, #tpu.memory_space<vmem>>, %arg5: memref<1x128xf32, #tpu.memory_space<vmem>>, %arg6: memref<128x256xbf16, #tpu.memory_space<vmem>>, %arg7: memref<1x256xf32, #tpu.memory_space<vmem>>, %arg8: memref<128x128xbf16, #tpu.memory_space<vmem>>, %arg9: memref<1x128xf32, #tpu.memory_space<vmem>>, %arg10: memref<8x128xf32, #tpu.memory_space<vmem>>, %arg11: memref<1x128xf32, #tpu.memory_space<vmem>>, %arg12: memref<1x128xf32, #tpu.memory_space<vmem>>) attributes {dimension_semantics = [#tpu.dimension_semantics<parallel>], iteration_bounds = array<i64: 1>, scalar_prefetch = 0 : i64, scratch_operands = 0 : i64, tpu.core_type = #tpu.core_type<tc>, window_params = [{transform_indices = @transform_0, window_bounds = array<i64: 8, 392>}, {pipeline_mode = #tpu.pipeline_mode<synchronous>, transform_indices = @transform_1, window_bounds = array<i64: 392, 256>}, {pipeline_mode = #tpu.pipeline_mode<synchronous>, transform_indices = @transform_2, window_bounds = array<i64: 1, 256>}, {pipeline_mode = #tpu.pipeline_mode<synchronous>, transform_indices = @transform_3, window_bounds = array<i64: 256, 128>}, {pipeline_mode = #tpu.pipeline_mode<synchronous>, transform_indices = @transform_4, window_bounds = array<i64: 1, 128>}, {pipeline_mode = #tpu.pipeline_mode<synchronous>, transform_indices = @transform_5, window_bounds = array<i64: 128, 256>}, {pipeline_mode = #tpu.pipeline_mode<synchronous>, transform_indices = @transform_6, window_bounds = array<i64: 1, 256>}, {pipeline_mode = #tpu.pipeline_mode<synchronous>, transform_indices = @transform_7, window_bounds = array<i64: 128, 128>}, {pipeline_mode = #tpu.pipeline_mode<synchronous>, transform_indices = @transform_8, window_bounds = array<i64: 1, 128>}, {transform_indices = @transform_9, window_bounds = array<i64: 8, 128>}, {transform_indices = @transform_10, window_bounds = array<i64: 1, 128>}, {transform_indices = @transform_11, window_bounds = array<i64: 1, 128>}]} {
    %c0 = arith.constant 0 : index
    %c0_0 = arith.constant 0 : index
    %0 = vector.load %arg1[%c0, %c0_0] : memref<8x392xf32, #tpu.memory_space<vmem>>, vector<8x392xf32>
    %1 = arith.truncf %0 : vector<8x392xf32> to vector<8x392xbf16>
    %c0_1 = arith.constant 0 : index
    %c0_2 = arith.constant 0 : index
    %2 = vector.load %arg2[%c0_1, %c0_2] : memref<392x256xbf16, #tpu.memory_space<vmem>>, vector<392x256xbf16>
    %cst = arith.constant dense<0.000000e+00> : vector<8x256xf32>
    %3 = tpu.matmul %1, %2, %cst {dimension_numbers = #tpu.dot_dimension_numbers<[1], [0], [0], [1], [0, 0, 1, 1], [], []>} : vector<8x392xbf16>, vector<392x256xbf16>, vector<8x256xf32> -> vector<8x256xf32>
    %c0_3 = arith.constant 0 : index
    %c0_4 = arith.constant 0 : index
    %4 = vector.load %arg3[%c0_3, %c0_4] : memref<1x256xf32, #tpu.memory_space<vmem>>, vector<1x256xf32>
    %5 = vector.broadcast %4 : vector<1x256xf32> to vector<8x256xf32>
    %6 = arith.addf %3, %5 : vector<8x256xf32>
    %cst_5 = arith.constant 0.000000e+00 : f32
    %7 = vector.broadcast %cst_5 : f32 to vector<8x256xf32>
    %8 = arith.maximumf %6, %7 : vector<8x256xf32>
    %9 = arith.truncf %8 : vector<8x256xf32> to vector<8x256xbf16>
    %c0_6 = arith.constant 0 : index
    %c0_7 = arith.constant 0 : index
    %10 = vector.load %arg4[%c0_6, %c0_7] : memref<256x128xbf16, #tpu.memory_space<vmem>>, vector<256x128xbf16>
    %cst_8 = arith.constant dense<0.000000e+00> : vector<8x128xf32>
    %11 = tpu.matmul %9, %10, %cst_8 {dimension_numbers = #tpu.dot_dimension_numbers<[1], [0], [0], [1], [0, 0, 1, 1], [], []>} : vector<8x256xbf16>, vector<256x128xbf16>, vector<8x128xf32> -> vector<8x128xf32>
    %c0_9 = arith.constant 0 : index
    %c0_10 = arith.constant 0 : index
    %12 = vector.load %arg5[%c0_9, %c0_10] : memref<1x128xf32, #tpu.memory_space<vmem>>, vector<1x128xf32>
    %13 = vector.broadcast %12 : vector<1x128xf32> to vector<8x128xf32>
    %14 = arith.addf %11, %13 : vector<8x128xf32>
    %cst_11 = arith.constant 0.000000e+00 : f32
    %15 = vector.broadcast %cst_11 : f32 to vector<8x128xf32>
    %16 = arith.maximumf %14, %15 : vector<8x128xf32>
    %17 = arith.truncf %16 : vector<8x128xf32> to vector<8x128xbf16>
    %c0_12 = arith.constant 0 : index
    %c0_13 = arith.constant 0 : index
    %18 = vector.load %arg6[%c0_12, %c0_13] : memref<128x256xbf16, #tpu.memory_space<vmem>>, vector<128x256xbf16>
    %cst_14 = arith.constant dense<0.000000e+00> : vector<8x256xf32>
    %19 = tpu.matmul %17, %18, %cst_14 {dimension_numbers = #tpu.dot_dimension_numbers<[1], [0], [0], [1], [0, 0, 1, 1], [], []>} : vector<8x128xbf16>, vector<128x256xbf16>, vector<8x256xf32> -> vector<8x256xf32>
    %c0_15 = arith.constant 0 : index
    %c0_16 = arith.constant 0 : index
    %20 = vector.load %arg7[%c0_15, %c0_16] : memref<1x256xf32, #tpu.memory_space<vmem>>, vector<1x256xf32>
    %21 = vector.broadcast %20 : vector<1x256xf32> to vector<8x256xf32>
    %22 = arith.addf %19, %21 : vector<8x256xf32>
    %23 = vector.extract_strided_slice %22 {offsets = [0, 0], sizes = [8, 128], strides = [1, 1]} : vector<8x256xf32> to vector<8x128xf32>
    %24 = vector.extract_strided_slice %22 {offsets = [0, 128], sizes = [8, 128], strides = [1, 1]} : vector<8x256xf32> to vector<8x128xf32>
    %cst_17 = arith.constant 0.000000e+00 : f32
    %25 = vector.broadcast %cst_17 : f32 to vector<8x128xf32>
    %26 = arith.maximumf %24, %25 : vector<8x128xf32>
    %27 = arith.truncf %26 : vector<8x128xf32> to vector<8x128xbf16>
    %c0_18 = arith.constant 0 : index
    %c0_19 = arith.constant 0 : index
    %28 = vector.load %arg8[%c0_18, %c0_19] : memref<128x128xbf16, #tpu.memory_space<vmem>>, vector<128x128xbf16>
    %cst_20 = arith.constant dense<0.000000e+00> : vector<8x128xf32>
    %29 = tpu.matmul %27, %28, %cst_20 {dimension_numbers = #tpu.dot_dimension_numbers<[1], [0], [0], [1], [0, 0, 1, 1], [], []>} : vector<8x128xbf16>, vector<128x128xbf16>, vector<8x128xf32> -> vector<8x128xf32>
    %c0_21 = arith.constant 0 : index
    %c0_22 = arith.constant 0 : index
    %30 = vector.load %arg9[%c0_21, %c0_22] : memref<1x128xf32, #tpu.memory_space<vmem>>, vector<1x128xf32>
    %31 = vector.broadcast %30 : vector<1x128xf32> to vector<8x128xf32>
    %32 = arith.addf %29, %31 : vector<8x128xf32>
    %cst_23 = arith.constant 0.000000e+00 : f32
    %33 = vector.broadcast %cst_23 : f32 to vector<8x128xf32>
    %34 = arith.subf %33, %32 : vector<8x128xf32>
    %35 = math.exp %34 : vector<8x128xf32>
    %cst_24 = arith.constant 1.000000e+00 : f32
    %36 = vector.broadcast %cst_24 : f32 to vector<8x128xf32>
    %37 = arith.addf %36, %35 : vector<8x128xf32>
    %cst_25 = arith.constant 1.000000e+00 : f32
    %38 = vector.broadcast %cst_25 : f32 to vector<8x128xf32>
    %39 = arith.divf %38, %37 : vector<8x128xf32>
    %40 = tpu.iota {dimensions = array<i32: 1>} : vector<8x128xi32>
    %c20_i32 = arith.constant 20 : i32
    %41 = vector.broadcast %c20_i32 : i32 to vector<8x128xi32>
    %42 = arith.cmpi eq, %40, %41 : vector<8x128xi32>
    %43 = arith.select %42, %39, %23 : vector<8x128xi1>, vector<8x128xf32>
    %c0_26 = arith.constant 0 : index
    %c0_27 = arith.constant 0 : index
    %44 = vector.load %arg10[%c0_26, %c0_27] : memref<8x128xf32, #tpu.memory_space<vmem>>, vector<8x128xf32>
    tpu.vector_store %arg10[%c0_26, %c0_27], %43 {strides = array<i32>} : memref<8x128xf32, #tpu.memory_space<vmem>>, vector<8x128xf32>,
    %45 = tpu.iota {dimensions = array<i32: 0>} : vector<8x128xi32>
    %c8_i32 = arith.constant 8 : i32
    %46 = arith.muli %arg0, %c8_i32 : i32
    %47 = vector.broadcast %46 : i32 to vector<8x128xi32>
    %48 = arith.addi %45, %47 : vector<8x128xi32>
    %c8_i32_28 = arith.constant 8 : i32
    %49 = vector.broadcast %c8_i32_28 : i32 to vector<8x128xi32>
    %50 = arith.cmpi slt, %48, %49 : vector<8x128xi32>
    %cst_29 = arith.constant -1.000000e+30 : f32
    %51 = vector.broadcast %cst_29 : f32 to vector<8x128xf32>
    %52 = arith.select %50, %23, %51 : vector<8x128xi1>, vector<8x128xf32>
    %cst_30 = arith.constant dense<0xFF800000> : vector<128xf32>
    %53 = vector.multi_reduction <maximumf>, %52, %cst_30 [0] : vector<8x128xf32> to vector<128xf32>
    %54 = vector.shape_cast %53 : vector<128xf32> to vector<1x128xf32>
    %c0_31 = arith.constant 0 : index
    %c0_32 = arith.constant 0 : index
    %55 = vector.load %arg11[%c0_31, %c0_32] : memref<1x128xf32, #tpu.memory_space<vmem>>, vector<1x128xf32>
    tpu.vector_store %arg11[%c0_31, %c0_32], %54 {strides = array<i32>} : memref<1x128xf32, #tpu.memory_space<vmem>>, vector<1x128xf32>,
    %56 = vector.broadcast %54 : vector<1x128xf32> to vector<8x128xf32>
    %57 = arith.subf %52, %56 : vector<8x128xf32>
    %58 = math.exp %57 : vector<8x128xf32>
    %cst_33 = arith.constant dense<0.000000e+00> : vector<128xf32>
    %59 = vector.multi_reduction <add>, %58, %cst_33 [0] : vector<8x128xf32> to vector<128xf32>
    %60 = vector.shape_cast %59 : vector<128xf32> to vector<1x128xf32>
    %c0_34 = arith.constant 0 : index
    %c0_35 = arith.constant 0 : index
    %61 = vector.load %arg12[%c0_34, %c0_35] : memref<1x128xf32, #tpu.memory_space<vmem>>, vector<1x128xf32>
    tpu.vector_store %arg12[%c0_34, %c0_35], %60 {strides = array<i32>} : memref<1x128xf32, #tpu.memory_space<vmem>>, vector<1x128xf32>,
    return
  }
  func.func @transform_0(%arg0: i32) -> (i32, i32) {
    %c0_i32 = arith.constant 0 : i32
    %c0_i32_0 = arith.constant 0 : i32
    return %arg0, %c0_i32 : i32, i32
  }
  func.func @transform_1(%arg0: i32) -> (i32, i32) {
    %c0_i32 = arith.constant 0 : i32
    %c0_i32_0 = arith.constant 0 : i32
    %c0_i32_1 = arith.constant 0 : i32
    return %c0_i32, %c0_i32_0 : i32, i32
  }
  func.func @transform_2(%arg0: i32) -> (i32, i32) {
    %c0_i32 = arith.constant 0 : i32
    %c0_i32_0 = arith.constant 0 : i32
    %c0_i32_1 = arith.constant 0 : i32
    return %c0_i32, %c0_i32_0 : i32, i32
  }
  func.func @transform_3(%arg0: i32) -> (i32, i32) {
    %c0_i32 = arith.constant 0 : i32
    %c0_i32_0 = arith.constant 0 : i32
    %c0_i32_1 = arith.constant 0 : i32
    return %c0_i32, %c0_i32_0 : i32, i32
  }
  func.func @transform_4(%arg0: i32) -> (i32, i32) {
    %c0_i32 = arith.constant 0 : i32
    %c0_i32_0 = arith.constant 0 : i32
    %c0_i32_1 = arith.constant 0 : i32
    return %c0_i32, %c0_i32_0 : i32, i32
  }
  func.func @transform_5(%arg0: i32) -> (i32, i32) {
    %c0_i32 = arith.constant 0 : i32
    %c0_i32_0 = arith.constant 0 : i32
    %c0_i32_1 = arith.constant 0 : i32
    return %c0_i32, %c0_i32_0 : i32, i32
  }
  func.func @transform_6(%arg0: i32) -> (i32, i32) {
    %c0_i32 = arith.constant 0 : i32
    %c0_i32_0 = arith.constant 0 : i32
    %c0_i32_1 = arith.constant 0 : i32
    return %c0_i32, %c0_i32_0 : i32, i32
  }
  func.func @transform_7(%arg0: i32) -> (i32, i32) {
    %c0_i32 = arith.constant 0 : i32
    %c0_i32_0 = arith.constant 0 : i32
    %c0_i32_1 = arith.constant 0 : i32
    return %c0_i32, %c0_i32_0 : i32, i32
  }
  func.func @transform_8(%arg0: i32) -> (i32, i32) {
    %c0_i32 = arith.constant 0 : i32
    %c0_i32_0 = arith.constant 0 : i32
    %c0_i32_1 = arith.constant 0 : i32
    return %c0_i32, %c0_i32_0 : i32, i32
  }
  func.func @transform_9(%arg0: i32) -> (i32, i32) {
    %c0_i32 = arith.constant 0 : i32
    %c0_i32_0 = arith.constant 0 : i32
    return %arg0, %c0_i32 : i32, i32
  }
  func.func @transform_10(%arg0: i32) -> (i32, i32) {
    %c0_i32 = arith.constant 0 : i32
    %c0_i32_0 = arith.constant 0 : i32
    return %arg0, %c0_i32 : i32, i32
  }
  func.func @transform_11(%arg0: i32) -> (i32, i32) {
    %c0_i32 = arith.constant 0 : i32
    %c0_i32_0 = arith.constant 0 : i32
    return %arg0, %c0_i32 : i32, i32
  }
}

</mosaic_0001>

<llo_original>
// kernel: tpu_custom_call.1
$region0: #{tpu_custom_call.1}
  #allocation0 [shape = 'u32[]', space=smem, size = 0x4, offset = 0x4, fixed_abs, tag = 'smem constant byte address 0x4 - core index']
  #allocation1 [shape = 'u32[72,128]{1,0:T(1,128)}', space=vmem, size = 0x9000, scoped, tag = 'internal scratch']
  %s0 = inlined_call_operand.hbm [shape: f32[8,392], index: 0, kind: input, shape index: {}]
  %s1 = inlined_call_operand.hbm [shape: bf16[392,256], index: 1, kind: input, shape index: {}]
  %s2 = inlined_call_operand.hbm [shape: f32[1,256], index: 2, kind: input, shape index: {}]
  %s3 = inlined_call_operand.hbm [shape: bf16[256,128], index: 3, kind: input, shape index: {}]
  %s4 = inlined_call_operand.vmem [shape: f32[1,128], index: 4, kind: input, shape index: {}]
  %s5 = inlined_call_operand.hbm [shape: bf16[128,256], index: 5, kind: input, shape index: {}]
  %s6 = inlined_call_operand.vmem [shape: f32[1,256], index: 6, kind: input, shape index: {}]
  %s7 = inlined_call_operand.hbm [shape: bf16[128,128], index: 7, kind: input, shape index: {}]
  %s8 = inlined_call_operand.vmem [shape: f32[1,128], index: 8, kind: input, shape index: {}]
  %s9 = inlined_call_operand.hbm [shape: f32[8,128], index: 9, kind: output, shape index: {0}]
  %s10 = inlined_call_operand.hbm [shape: f32[1,128], index: 10, kind: output, shape index: {1}]
  %s11 = inlined_call_operand.hbm [shape: f32[1,128], index: 11, kind: output, shape index: {2}]
  %12 = xla_tuple %s9, %s10, %s11
  %s13 = sld [smem:[#allocation0]]
  $region86: #{tpu_custom_call.1} parent=0
    _
  %s15 = ssub.s32 1, %s13
  %s16 = scalar_select 0, %s15, %s13
  $region1: #{tpu_custom_call.1} parent=0
    #allocation2 [shape = 'u8[16384]{0}', space=vmem, size = 0x4000, scoped, tag = 'input window, operand 0, single buffered']
    #allocation3 [shape = 's32[1]{0}', space=sflag, size = 0x4, scoped, tag = 'scoped memory for tpu_custom_call.1']
    #allocation4 [shape = 's32[1]{0}', space=sflag, size = 0x4, scoped, tag = 'scoped memory for tpu_custom_call.1']
    #allocation5 [shape = 'u8[200704]{0}', space=vmem, size = 0x31000, scoped, tag = 'input window, operand 1, single buffered']
    #allocation6 [shape = 's32[1]{0}', space=sflag, size = 0x4, scoped, tag = 'scoped memory for tpu_custom_call.1']
    #allocation7 [shape = 'u8[1024]{0}', space=vmem, size = 0x400, scoped, tag = 'input window, operand 2, single buffered']
    #allocation8 [shape = 'u8[65536]{0}', space=vmem, size = 0x10000, scoped, tag = 'input window, operand 3, single buffered']
    #allocation9 [shape = 's32[1]{0}', space=sflag, size = 0x4, scoped, tag = 'scoped memory for tpu_custom_call.1']
    #allocation10 [shape = 'u8[65536]{0}', space=vmem, size = 0x10000, scoped, tag = 'input window, operand 5, single buffered']
    #allocation11 [shape = 'u8[32768]{0}', space=vmem, size = 0x8000, scoped, tag = 'input window, operand 7, single buffered']
    #allocation12 [shape = 's32[1]{0}', space=sflag, size = 0x4, scoped, tag = 'scoped memory for tpu_custom_call.1']
    #allocation13 [shape = 'u8[4096]{0}', space=vmem, size = 0x1000, scoped, tag = 'output window, operand 0, single buffered']
    #allocation14 [shape = 'u8[512]{0}', space=vmem, size = 0x400, scoped, tag = 'output window, operand 1, single buffered']
    #allocation15 [shape = 's32[1]{0}', space=sflag, size = 0x4, scoped, tag = 'scoped memory for tpu_custom_call.1']
    #allocation16 [shape = 'u8[512]{0}', space=vmem, size = 0x400, scoped, tag = 'output window, operand 2, single buffered']
    %17 = vsyncpa [#allocation3], 0
    %18 = vsyncpa [#allocation6], 0
    %19 = vsyncpa [#allocation9], 0
    %20 = vsyncpa [#allocation12], 0
    %21 = vsyncpa [#allocation4], 0
    %22 = vsyncpa [#allocation15], 0
    // Predicated region
    $region2: #{tpu_custom_call.1} parent=1 // pred_check
      _
    $region3: #{tpu_custom_call.1} parent=1 // pred_check_branch
      %24 = sbr.rel (0) target = $region5
    $region4: #{tpu_custom_call.1} parent=1 // pred_region
      %26 = vsyncadd [#allocation3], 0
      %s28 = sshll.u32 %s0, 4
      %s29 = int_to_ptr.hbm [resolvable:$true] %s28
      %s30 = sshll.u32 [#allocation2], 4
      %s31 = int_to_ptr.vmem [resolvable:$true] %s30
      %33 = dma.hbm_to_vmem [thread:$0]  %s29, 512, %s31, [#allocation3]
    $region5: #{tpu_custom_call.1} parent=1 // pred_fallthru
      _
    // Predicated region
    $region6: #{tpu_custom_call.1} parent=1 // pred_check
      _
    $region7: #{tpu_custom_call.1} parent=1 // pred_check_branch
      %35 = sbr.rel (0) target = $region9
    $region8: #{tpu_custom_call.1} parent=1 // pred_region
      %37 = vsyncadd [#allocation6], 0
      %s38 = sshll.u32 %s1, 4
      %s39 = int_to_ptr.hbm [resolvable:$true] %s38
      %s40 = sshll.u32 [#allocation5], 4
      %s41 = int_to_ptr.vmem [resolvable:$true] %s40
      %46 = dma.hbm_to_vmem [thread:$0]  %s39, 6272, %s41, [#allocation6], 128, 128, 8
    $region9: #{tpu_custom_call.1} parent=1 // pred_fallthru
      _
    // Predicated region
    $region10: #{tpu_custom_call.1} parent=1 // pred_check
      _
    $region11: #{tpu_custom_call.1} parent=1 // pred_check_branch
      %48 = sbr.rel (0) target = $region13
    $region12: #{tpu_custom_call.1} parent=1 // pred_region
      %50 = vsyncadd [#allocation6], 0
      %s52 = sshll.u32 %s2, 4
      %s53 = int_to_ptr.hbm [resolvable:$true] %s52
      %s54 = sshll.u32 [#allocation7], 4
      %s55 = int_to_ptr.vmem [resolvable:$true] %s54
      %57 = dma.hbm_to_vmem [thread:$0]  %s53, 32, %s55, [#allocation6]
    $region13: #{tpu_custom_call.1} parent=1 // pred_fallthru
      _
    // Predicated region
    $region14: #{tpu_custom_call.1} parent=1 // pred_check
      _
    $region15: #{tpu_custom_call.1} parent=1 // pred_check_branch
      %59 = sbr.rel (0) target = $region17
    $region16: #{tpu_custom_call.1} parent=1 // pred_region
      %61 = vsyncadd [#allocation9], 0
      %s62 = sshll.u32 %s3, 4
      %s63 = int_to_ptr.hbm [resolvable:$true] %s62
      %s64 = sshll.u32 [#allocation8], 4
      %s65 = int_to_ptr.vmem [resolvable:$true] %s64
      %70 = dma.hbm_to_vmem [thread:$0]  %s63, 2048, %s65, [#allocation9], 64, 64, 4
    $region17: #{tpu_custom_call.1} parent=1 // pred_fallthru
      _
    // Predicated region
    $region18: #{tpu_custom_call.1} parent=1 // pred_check
      _
    $region19: #{tpu_custom_call.1} parent=1 // pred_check_branch
      %72 = sbr.rel (0) target = $region21
    $region20: #{tpu_custom_call.1} parent=1 // pred_region
      _
    $region21: #{tpu_custom_call.1} parent=1 // pred_fallthru
      _
    // Predicated region
    $region22: #{tpu_custom_call.1} parent=1 // pred_check
      _
    $region23: #{tpu_custom_call.1} parent=1 // pred_check_branch
      %74 = sbr.rel (0) target = $region25
    $region24: #{tpu_custom_call.1} parent=1 // pred_region
      %76 = vsyncadd [#allocation9], 0
      %s77 = sshll.u32 %s5, 4
      %s78 = int_to_ptr.hbm [resolvable:$true] %s77
      %s79 = sshll.u32 [#allocation10], 4
      %s80 = int_to_ptr.vmem [resolvable:$true] %s79
      %85 = dma.hbm_to_vmem [thread:$0]  %s78, 2048, %s80, [#allocation9], 128, 128, 8
    $region25: #{tpu_custom_call.1} parent=1 // pred_fallthru
      _
    // Predicated region
    $region26: #{tpu_custom_call.1} parent=1 // pred_check
      _
    $region27: #{tpu_custom_call.1} parent=1 // pred_check_branch
      %87 = sbr.rel (0) target = $region29
    $region28: #{tpu_custom_call.1} parent=1 // pred_region
      _
    $region29: #{tpu_custom_call.1} parent=1 // pred_fallthru
      _
    // Predicated region
    $region30: #{tpu_custom_call.1} parent=1 // pred_check
      _
    $region31: #{tpu_custom_call.1} parent=1 // pred_check_branch
      %89 = sbr.rel (0) target = $region33
    $region32: #{tpu_custom_call.1} parent=1 // pred_region
      %91 = vsyncadd [#allocation12], 0
      %s92 = sshll.u32 %s7, 4
      %s93 = int_to_ptr.hbm [resolvable:$true] %s92
      %s94 = sshll.u32 [#allocation11], 4
      %s95 = int_to_ptr.vmem [resolvable:$true] %s94
      %100 = dma.hbm_to_vmem [thread:$0]  %s93, 1024, %s95, [#allocation12], 64, 64, 4
    $region33: #{tpu_custom_call.1} parent=1 // pred_fallthru
      _
    // Predicated region
    $region34: #{tpu_custom_call.1} parent=1 // pred_check
      _
    $region35: #{tpu_custom_call.1} parent=1 // pred_check_branch
      %102 = sbr.rel (0) target = $region37
    $region36: #{tpu_custom_call.1} parent=1 // pred_region
      _
    $region37: #{tpu_custom_call.1} parent=1 // pred_fallthru
      _
    // Predicated region
    $region38: #{tpu_custom_call.1} parent=1 // pred_check
      _
    $region39: #{tpu_custom_call.1} parent=1 // pred_check_branch
      %104 = sbr.rel (0) target = $region41
    $region40: #{tpu_custom_call.1} parent=1 // pred_region
      %106 = dma.done [#allocation3], 512
    $region41: #{tpu_custom_call.1} parent=1 // pred_fallthru
      _
    // Predicated region
    $region42: #{tpu_custom_call.1} parent=1 // pred_check
      _
    $region43: #{tpu_custom_call.1} parent=1 // pred_check_branch
      %108 = sbr.rel (0) target = $region45
    $region44: #{tpu_custom_call.1} parent=1 // pred_region
      %110 = dma.done [#allocation6], 6272
    $region45: #{tpu_custom_call.1} parent=1 // pred_fallthru
      _
    // Predicated region
    $region46: #{tpu_custom_call.1} parent=1 // pred_check
      _
    $region47: #{tpu_custom_call.1} parent=1 // pred_check_branch
      %112 = sbr.rel (0) target = $region49
    $region48: #{tpu_custom_call.1} parent=1 // pred_region
      %114 = dma.done [#allocation6], 32
    $region49: #{tpu_custom_call.1} parent=1 // pred_fallthru
      _
    // Predicated region
    $region50: #{tpu_custom_call.1} parent=1 // pred_check
      _
    $region51: #{tpu_custom_call.1} parent=1 // pred_check_branch
      %116 = sbr.rel (0) target = $region53
    $region52: #{tpu_custom_call.1} parent=1 // pred_region
      %118 = dma.done [#allocation9], 2048
    $region53: #{tpu_custom_call.1} parent=1 // pred_fallthru
      _
    // Predicated region
    $region54: #{tpu_custom_call.1} parent=1 // pred_check
      _
    $region55: #{tpu_custom_call.1} parent=1 // pred_check_branch
      %120 = sbr.rel (0) target = $region57
    $region56: #{tpu_custom_call.1} parent=1 // pred_region
      %122 = dma.done [#allocation9], 2048
    $region57: #{tpu_custom_call.1} parent=1 // pred_fallthru
      _
    // Predicated region
    $region58: #{tpu_custom_call.1} parent=1 // pred_check
      _
    $region59: #{tpu_custom_call.1} parent=1 // pred_check_branch
      %124 = sbr.rel (0) target = $region61
    $region60: #{tpu_custom_call.1} parent=1 // pred_region
      %126 = dma.done [#allocation12], 1024
    $region61: #{tpu_custom_call.1} parent=1 // pred_fallthru
      _
    %v128 = vld [vmem:[#allocation2] sm:$0xff]
    %v129 = vld [vmem:[#allocation2 + $0x8] sm:$0xff]
    %v130 = vld [vmem:[#allocation2 + $0x10] sm:$0xff]
    %v131 = vld [vmem:[#allocation2 + $0x18] sm:$0xff]
    %v132 = vpack.c.bf16 %v128, %v128
    %v133 = vpack.c.bf16 %v129, %v129
    %v134 = vpack.c.bf16 %v130, %v130
    %v135 = vpack.c.bf16 %v131, %v131
    %v136 = vld [vmem:[#allocation5] sm:$0xff]
    %v137 = vld [vmem:[#allocation5 + $0x8] sm:$0xff]
    %v138 = vld [vmem:[#allocation5 + $0x10] sm:$0xff]
    %v139 = vld [vmem:[#allocation5 + $0x18] sm:$0xff]
    %v140 = vld [vmem:[#allocation5 + $0x20] sm:$0xff]
    %v141 = vld [vmem:[#allocation5 + $0x28] sm:$0xff]
    %v142 = vld [vmem:[#allocation5 + $0x30] sm:$0xff]
    %v143 = vld [vmem:[#allocation5 + $0x38] sm:$0xff]
    %v144 = vld [vmem:[#allocation5 + $0x40] sm:$0xff]
    %v145 = vld [vmem:[#allocation5 + $0x48] sm:$0xff]
    %v146 = vld [vmem:[#allocation5 + $0x50] sm:$0xff]
    %v147 = vld [vmem:[#allocation5 + $0x58] sm:$0xff]
    %v148 = vld [vmem:[#allocation5 + $0x60] sm:$0xff]
    %v149 = vld [vmem:[#allocation5 + $0x68] sm:$0xff]
    %v150 = vld [vmem:[#allocation5 + $0x70] sm:$0xff]
    %v151 = vld [vmem:[#allocation5 + $0x78] sm:$0xff]
    %v152 = vld [vmem:[#allocation5 + $0x80] sm:$0xff]
    %v153 = vld [vmem:[#allocation5 + $0x88] sm:$0xff]
    %v154 = vld [vmem:[#allocation5 + $0x90] sm:$0xff]
    %v155 = vld [vmem:[#allocation5 + $0x98] sm:$0xff]
    %v156 = vld [vmem:[#allocation5 + $0xa0] sm:$0xff]
    %v157 = vld [vmem:[#allocation5 + $0xa8] sm:$0xff]
    %v158 = vld [vmem:[#allocation5 + $0xb0] sm:$0xff]
    %v159 = vld [vmem:[#allocation5 + $0xb8] sm:$0xff]
    %v160 = vld [vmem:[#allocation5 + $0xc0] sm:$0xff]
    %v161 = vld [vmem:[#allocation5 + $0xc8] sm:$0xff]
    %v162 = vld [vmem:[#allocation5 + $0xd0] sm:$0xff]
    %v163 = vld [vmem:[#allocation5 + $0xd8] sm:$0xff]
    %v164 = vld [vmem:[#allocation5 + $0xe0] sm:$0xff]
    %v165 = vld [vmem:[#allocation5 + $0xe8] sm:$0xff]
    %v166 = vld [vmem:[#allocation5 + $0xf0] sm:$0xff]
    %v167 = vld [vmem:[#allocation5 + $0xf8] sm:$0xff]
    %v168 = vld [vmem:[#allocation5 + $0x100] sm:$0xff]
    %v169 = vld [vmem:[#allocation5 + $0x108] sm:$0xff]
    %v170 = vld [vmem:[#allocation5 + $0x110] sm:$0xff]
    %v171 = vld [vmem:[#allocation5 + $0x118] sm:$0xff]
    %v172 = vld [vmem:[#allocation5 + $0x120] sm:$0xff]
    %v173 = vld [vmem:[#allocation5 + $0x128] sm:$0xff]
    %v174 = vld [vmem:[#allocation5 + $0x130] sm:$0xff]
    %v175 = vld [vmem:[#allocation5 + $0x138] sm:$0xff]
    %v176 = vld [vmem:[#allocation5 + $0x140] sm:$0xff]
    %v177 = vld [vmem:[#allocation5 + $0x148] sm:$0xff]
    %v178 = vld [vmem:[#allocation5 + $0x150] sm:$0xff]
    %v179 = vld [vmem:[#allocation5 + $0x158] sm:$0xff]
    %v180 = vld [vmem:[#allocation5 + $0x160] sm:$0xff]
    %v181 = vld [vmem:[#allocation5 + $0x168] sm:$0xff]
    %v182 = vld [vmem:[#allocation5 + $0x170] sm:$0xff]
    %v183 = vld [vmem:[#allocation5 + $0x178] sm:$0xff]
    %v184 = vld [vmem:[#allocation5 + $0x180] sm:$0xff]
    %v185 = vld [vmem:[#allocation7] sm:$0x3]
    %v187 = vperm.slane %v185, 0
    %v188 = vperm.slane %v185, 1
    %v240 = vunpack.c.l.b16 %v136
    %v241 = vunpack.c.h.b16 %v136
    %v242 = vunpack.c.l.b16 %v137
    %v243 = vunpack.c.h.b16 %v137
    %v244 = vunpack.c.l.b16 %v138
    %v245 = vunpack.c.h.b16 %v138
    %v246 = vunpack.c.l.b16 %v139
    %v247 = vunpack.c.h.b16 %v139
    %v248 = vunpack.c.l.b16 %v140
    %v249 = vunpack.c.h.b16 %v140
    %v250 = vunpack.c.l.b16 %v141
    %v251 = vunpack.c.h.b16 %v141
    %v252 = vunpack.c.l.b16 %v142
    %v253 = vunpack.c.h.b16 %v142
    %v254 = vunpack.c.l.b16 %v143
    %v255 = vunpack.c.h.b16 %v143
    %v256 = vunpack.c.l.b16 %v144
    %v257 = vunpack.c.h.b16 %v144
    %v258 = vunpack.c.l.b16 %v145
    %v259 = vunpack.c.h.b16 %v145
    %v260 = vunpack.c.l.b16 %v146
    %v261 = vunpack.c.h.b16 %v146
    %v262 = vunpack.c.l.b16 %v147
    %v263 = vunpack.c.h.b16 %v147
    %v264 = vunpack.c.l.b16 %v148
    %v265 = vunpack.c.h.b16 %v148
    %v266 = vunpack.c.l.b16 %v149
    %v267 = vunpack.c.h.b16 %v149
    %v268 = vunpack.c.l.b16 %v150
    %v269 = vunpack.c.h.b16 %v150
    %v270 = vunpack.c.l.b16 %v151
    %v271 = vunpack.c.h.b16 %v151
    %v272 = vunpack.c.l.b16 %v152
    %v273 = vunpack.c.h.b16 %v152
    %v274 = vunpack.c.l.b16 %v153
    %v275 = vunpack.c.h.b16 %v153
    %v276 = vunpack.c.l.b16 %v154
    %v277 = vunpack.c.h.b16 %v154
    %v278 = vunpack.c.l.b16 %v155
    %v279 = vunpack.c.h.b16 %v155
    %v280 = vunpack.c.l.b16 %v156
    %v281 = vunpack.c.h.b16 %v156
    %v282 = vunpack.c.l.b16 %v157
    %v283 = vunpack.c.h.b16 %v157
    %v284 = vunpack.c.l.b16 %v158
    %v285 = vunpack.c.h.b16 %v158
    %v286 = vunpack.c.l.b16 %v159
    %v287 = vunpack.c.h.b16 %v159
    %v288 = vunpack.c.l.b16 %v160
    %v289 = vunpack.c.h.b16 %v160
    %v290 = vunpack.c.l.b16 %v161
    %v291 = vunpack.c.h.b16 %v161
    %v292 = vunpack.c.l.b16 %v162
    %v293 = vunpack.c.h.b16 %v162
    %v294 = vunpack.c.l.b16 %v163
    %v295 = vunpack.c.h.b16 %v163
    %v296 = vunpack.c.l.b16 %v164
    %v297 = vunpack.c.h.b16 %v164
    %v298 = vunpack.c.l.b16 %v165
    %v299 = vunpack.c.h.b16 %v165
    %v300 = vunpack.c.l.b16 %v166
    %v301 = vunpack.c.h.b16 %v166
    %v302 = vunpack.c.l.b16 %v167
    %v303 = vunpack.c.h.b16 %v167
    %v304 = vunpack.c.l.b16 %v168
    %v305 = vunpack.c.h.b16 %v168
    %v306 = vunpack.c.l.b16 %v169
    %v307 = vunpack.c.h.b16 %v169
    %v308 = vunpack.c.l.b16 %v170
    %v309 = vunpack.c.h.b16 %v170
    %v310 = vunpack.c.l.b16 %v171
    %v311 = vunpack.c.h.b16 %v171
    %v312 = vunpack.c.l.b16 %v172
    %v313 = vunpack.c.h.b16 %v172
    %v314 = vunpack.c.l.b16 %v173
    %v315 = vunpack.c.h.b16 %v173
    %v316 = vunpack.c.l.b16 %v174
    %v317 = vunpack.c.h.b16 %v174
    %v318 = vunpack.c.l.b16 %v175
    %v319 = vunpack.c.h.b16 %v175
    %v320 = vunpack.c.l.b16 %v176
    %v321 = vunpack.c.h.b16 %v176
    %v322 = vunpack.c.l.b16 %v177
    %v323 = vunpack.c.h.b16 %v177
    %v324 = vunpack.c.l.b16 %v178
    %v325 = vunpack.c.h.b16 %v178
    %v326 = vunpack.c.l.b16 %v179
    %v327 = vunpack.c.h.b16 %v179
    %v328 = vunpack.c.l.b16 %v180
    %v329 = vunpack.c.h.b16 %v180
    %v330 = vunpack.c.l.b16 %v181
    %v331 = vunpack.c.h.b16 %v181
    %v332 = vunpack.c.l.b16 %v182
    %v333 = vunpack.c.h.b16 %v182
    %v334 = vunpack.c.l.b16 %v183
    %v335 = vunpack.c.h.b16 %v183
    %v336 = vunpack.c.l.b16 %v184
    %v337 = vunpack.c.h.b16 %v184
    %v338 = vpack.c.b16 %v242, %v240
    %v339 = vpack.c.b16 %v243, %v241
    %v340 = vpack.c.b16 %v246, %v244
    %v341 = vpack.c.b16 %v247, %v245
    %v342 = vpack.c.b16 %v250, %v248
    %v343 = vpack.c.b16 %v251, %v249
    %v344 = vpack.c.b16 %v254, %v252
    %v345 = vpack.c.b16 %v255, %v253
    %v346 = vpack.c.b16 %v258, %v256
    %v347 = vpack.c.b16 %v259, %v257
    %v348 = vpack.c.b16 %v262, %v260
    %v349 = vpack.c.b16 %v263, %v261
    %v350 = vpack.c.b16 %v266, %v264
    %v351 = vpack.c.b16 %v267, %v265
    %v352 = vpack.c.b16 %v270, %v268
    %v353 = vpack.c.b16 %v271, %v269
    %v354 = vpack.c.b16 %v274, %v272
    %v355 = vpack.c.b16 %v275, %v273
    %v356 = vpack.c.b16 %v278, %v276
    %v357 = vpack.c.b16 %v279, %v277
    %v358 = vpack.c.b16 %v282, %v280
    %v359 = vpack.c.b16 %v283, %v281
    %v360 = vpack.c.b16 %v286, %v284
    %v361 = vpack.c.b16 %v287, %v285
    %v362 = vpack.c.b16 %v290, %v288
    %v363 = vpack.c.b16 %v291, %v289
    %v364 = vpack.c.b16 %v294, %v292
    %v365 = vpack.c.b16 %v295, %v293
    %v366 = vpack.c.b16 %v298, %v296
    %v367 = vpack.c.b16 %v299, %v297
    %v368 = vpack.c.b16 %v302, %v300
    %v369 = vpack.c.b16 %v303, %v301
    %v370 = vpack.c.b16 %v306, %v304
    %v371 = vpack.c.b16 %v307, %v305
    %v372 = vpack.c.b16 %v310, %v308
    %v373 = vpack.c.b16 %v311, %v309
    %v374 = vpack.c.b16 %v314, %v312
    %v375 = vpack.c.b16 %v315, %v313
    %v376 = vpack.c.b16 %v318, %v316
    %v377 = vpack.c.b16 %v319, %v317
    %v378 = vpack.c.b16 %v322, %v320
    %v379 = vpack.c.b16 %v323, %v321
    %v380 = vpack.c.b16 %v326, %v324
    %v381 = vpack.c.b16 %v327, %v325
    %v382 = vpack.c.b16 %v330, %v328
    %v383 = vpack.c.b16 %v331, %v329
    %v384 = vpack.c.b16 %v334, %v332
    %v385 = vpack.c.b16 %v335, %v333
    %v386 = vpack.c.b16 %v336, %v336
    %v387 = vpack.c.b16 %v337, %v337
    %vm436 = vcmask 64512
    %v438 = vsel %vm436, %v135, 0
    %vm440 = vcmask 1043456
    %v442 = vsel %vm440, %v386, 0
    %v445 = vsel %vm440, %v387, 0
    %447 = vmatpush.bf16.msra.mxu0 %v352
    %448 = vmatpush.bf16.msra.mxu0 %v350
    %449 = vmatpush.bf16.msra.mxu0 %v348
    %450 = vmatpush.bf16.msra.mxu0 %v346
    %451 = vmatpush.bf16.msra.mxu0 %v344
    %452 = vmatpush.bf16.msra.mxu0 %v342
    %453 = vmatpush.bf16.msra.mxu0 %v340
    %454 = vmatpush.bf16.msra.mxu0 %v338
    %455 = vmatmul.bf16.gmra.mxu0 %v132
    %v456 = vpop.f32.mrf.mxu0
    %v457 = vadd.f32 %v187, %v456
    %v458 = vpop.f32.mrf.mxu0
    %459 = vdwg.mxu0
    %460 = vmatpush.bf16.msra.mxu0 %v368
    %461 = vmatpush.bf16.msra.mxu0 %v366
    %462 = vmatpush.bf16.msra.mxu0 %v364
    %463 = vmatpush.bf16.msra.mxu0 %v362
    %464 = vmatpush.bf16.msra.mxu0 %v360
    %465 = vmatpush.bf16.msra.mxu0 %v358
    %466 = vmatpush.bf16.msra.mxu0 %v356
    %467 = vmatpush.bf16.msra.mxu0 %v354
    %468 = vmatmul.bf16.gmra.mxu0 %v133
    %v469 = vpop.f32.mrf.mxu0
    %v470 = vadd.f32 %v457, %v469
    %v471 = vpop.f32.mrf.mxu0
    %472 = vdwg.mxu0
    %473 = vmatpush.bf16.msra.mxu0 %v384
    %474 = vmatpush.bf16.msra.mxu0 %v382
    %475 = vmatpush.bf16.msra.mxu0 %v380
    %476 = vmatpush.bf16.msra.mxu0 %v378
    %477 = vmatpush.bf16.msra.mxu0 %v376
    %478 = vmatpush.bf16.msra.mxu0 %v374
    %479 = vmatpush.bf16.msra.mxu0 %v372
    %480 = vmatpush.bf16.msra.mxu0 %v370
    %481 = vmatmul.bf16.gmra.mxu0 %v134
    %v482 = vpop.f32.mrf.mxu0
    %v483 = vadd.f32 %v470, %v482
    %v484 = vpop.f32.mrf.mxu0
    %485 = vdwg.mxu0
    %486 = vmatpush.bf16.msra.mxu0 0
    %487 = vmatpush.bf16.msra.mxu0 0
    %488 = vmatpush.bf16.msra.mxu0 0
    %489 = vmatpush.bf16.msra.mxu0 0
    %490 = vmatpush.bf16.msra.mxu0 0
    %491 = vmatpush.bf16.msra.mxu0 0
    %492 = vmatpush.bf16.msra.mxu0 0
    %493 = vmatpush.bf16.msra.mxu0 %v442
    %494 = vmatmul.bf16.gmra.mxu0 %v438
    %v495 = vpop.f32.mrf.mxu0
    %v496 = vadd.f32 %v483, %v495
    %v497 = vpop.f32.mrf.mxu0
    %498 = vdwg.mxu0
    %499 = vmatpush.bf16.msra.mxu0 %v353
    %500 = vmatpush.bf16.msra.mxu0 %v351
    %501 = vmatpush.bf16.msra.mxu0 %v349
    %502 = vmatpush.bf16.msra.mxu0 %v347
    %503 = vmatpush.bf16.msra.mxu0 %v345
    %504 = vmatpush.bf16.msra.mxu0 %v343
    %505 = vmatpush.bf16.msra.mxu0 %v341
    %506 = vmatpush.bf16.msra.mxu0 %v339
    %507 = vmatmul.bf16.gmra.mxu0 %v132
    %v508 = vpop.f32.mrf.mxu0
    %v509 = vadd.f32 %v188, %v508
    %v510 = vpop.f32.mrf.mxu0
    %511 = vdwg.mxu0
    %512 = vmatpush.bf16.msra.mxu0 %v369
    %513 = vmatpush.bf16.msra.mxu0 %v367
    %514 = vmatpush.bf16.msra.mxu0 %v365
    %515 = vmatpush.bf16.msra.mxu0 %v363
    %516 = vmatpush.bf16.msra.mxu0 %v361
    %517 = vmatpush.bf16.msra.mxu0 %v359
    %518 = vmatpush.bf16.msra.mxu0 %v357
    %519 = vmatpush.bf16.msra.mxu0 %v355
    %520 = vmatmul.bf16.gmra.mxu0 %v133
    %v521 = vpop.f32.mrf.mxu0
    %v522 = vadd.f32 %v509, %v521
    %v523 = vpop.f32.mrf.mxu0
    %524 = vdwg.mxu0
    %525 = vmatpush.bf16.msra.mxu0 %v385
    %526 = vmatpush.bf16.msra.mxu0 %v383
    %527 = vmatpush.bf16.msra.mxu0 %v381
    %528 = vmatpush.bf16.msra.mxu0 %v379
    %529 = vmatpush.bf16.msra.mxu0 %v377
    %530 = vmatpush.bf16.msra.mxu0 %v375
    %531 = vmatpush.bf16.msra.mxu0 %v373
    %532 = vmatpush.bf16.msra.mxu0 %v371
    %533 = vmatmul.bf16.gmra.mxu0 %v134
    %v534 = vpop.f32.mrf.mxu0
    %v535 = vadd.f32 %v522, %v534
    %v536 = vpop.f32.mrf.mxu0
    %537 = vdwg.mxu0
    %538 = vmatpush.bf16.msra.mxu0 0
    %539 = vmatpush.bf16.msra.mxu0 0
    %540 = vmatpush.bf16.msra.mxu0 0
    %541 = vmatpush.bf16.msra.mxu0 0
    %542 = vmatpush.bf16.msra.mxu0 0
    %543 = vmatpush.bf16.msra.mxu0 0
    %544 = vmatpush.bf16.msra.mxu0 0
    %545 = vmatpush.bf16.msra.mxu0 %v445
    %546 = vmatmul.bf16.gmra.mxu0 %v438
    %v547 = vpop.f32.mrf.mxu0
    %v548 = vadd.f32 %v535, %v547
    %v549 = vpop.f32.mrf.mxu0
    %550 = vdwg.mxu0
    %v551 = vmax.f32 %v496, 0.0
    %v552 = vmax.f32 %v548, 0.0
    %v553 = vpack.c.bf16 %v551, %v551
    %v554 = vpack.c.bf16 %v552, %v552
    %v555 = vld [vmem:[#allocation8] sm:$0xf]
    %v556 = vld [vmem:[#allocation8 + $0x4] sm:$0xf]
    %v557 = vld [vmem:[#allocation8 + $0x8] sm:$0xf]
    %v558 = vld [vmem:[#allocation8 + $0xc] sm:$0xf]
    %v559 = vld [vmem:[#allocation8 + $0x10] sm:$0xf]
    %v560 = vld [vmem:[#allocation8 + $0x14] sm:$0xf]
    %v561 = vld [vmem:[#allocation8 + $0x18] sm:$0xf]
    %v562 = vld [vmem:[#allocation8 + $0x1c] sm:$0xf]
    %v563 = vld [vmem:[#allocation8 + $0x20] sm:$0xf]
    %v564 = vld [vmem:[#allocation8 + $0x24] sm:$0xf]
    %v565 = vld [vmem:[#allocation8 + $0x28] sm:$0xf]
    %v566 = vld [vmem:[#allocation8 + $0x2c] sm:$0xf]
    %v567 = vld [vmem:[#allocation8 + $0x30] sm:$0xf]
    %v568 = vld [vmem:[#allocation8 + $0x34] sm:$0xf]
    %v569 = vld [vmem:[#allocation8 + $0x38] sm:$0xf]
    %v570 = vld [vmem:[#allocation8 + $0x3c] sm:$0xf]
    %v571 = vld [vmem:[#allocation8 + $0x40] sm:$0xf]
    %v572 = vld [vmem:[#allocation8 + $0x44] sm:$0xf]
    %v573 = vld [vmem:[#allocation8 + $0x48] sm:$0xf]
    %v574 = vld [vmem:[#allocation8 + $0x4c] sm:$0xf]
    %v575 = vld [vmem:[#allocation8 + $0x50] sm:$0xf]
    %v576 = vld [vmem:[#allocation8 + $0x54] sm:$0xf]
    %v577 = vld [vmem:[#allocation8 + $0x58] sm:$0xf]
    %v578 = vld [vmem:[#allocation8 + $0x5c] sm:$0xf]
    %v579 = vld [vmem:[#allocation8 + $0x60] sm:$0xf]
    %v580 = vld [vmem:[#allocation8 + $0x64] sm:$0xf]
    %v581 = vld [vmem:[#allocation8 + $0x68] sm:$0xf]
    %v582 = vld [vmem:[#allocation8 + $0x6c] sm:$0xf]
    %v583 = vld [vmem:[#allocation8 + $0x70] sm:$0xf]
    %v584 = vld [vmem:[#allocation8 + $0x74] sm:$0xf]
    %v585 = vld [vmem:[#allocation8 + $0x78] sm:$0xf]
    %v586 = vld [vmem:[#allocation8 + $0x7c] sm:$0xf]
    %v587 = vld [vmem:[%s4] sm:$0x1]
    %v589 = vperm.slane %v587, 0
    %v623 = vunpack.c.l.b16 %v555
    %v624 = vunpack.c.l.b16 %v556
    %v625 = vunpack.c.l.b16 %v557
    %v626 = vunpack.c.l.b16 %v558
    %v627 = vunpack.c.l.b16 %v559
    %v628 = vunpack.c.l.b16 %v560
    %v629 = vunpack.c.l.b16 %v561
    %v630 = vunpack.c.l.b16 %v562
    %v631 = vunpack.c.l.b16 %v563
    %v632 = vunpack.c.l.b16 %v564
    %v633 = vunpack.c.l.b16 %v565
    %v634 = vunpack.c.l.b16 %v566
    %v635 = vunpack.c.l.b16 %v567
    %v636 = vunpack.c.l.b16 %v568
    %v637 = vunpack.c.l.b16 %v569
    %v638 = vunpack.c.l.b16 %v570
    %v639 = vunpack.c.l.b16 %v571
    %v640 = vunpack.c.l.b16 %v572
    %v641 = vunpack.c.l.b16 %v573
    %v642 = vunpack.c.l.b16 %v574
    %v643 = vunpack.c.l.b16 %v575
    %v644 = vunpack.c.l.b16 %v576
    %v645 = vunpack.c.l.b16 %v577
    %v646 = vunpack.c.l.b16 %v578
    %v647 = vunpack.c.l.b16 %v579
    %v648 = vunpack.c.l.b16 %v580
    %v649 = vunpack.c.l.b16 %v581
    %v650 = vunpack.c.l.b16 %v582
    %v651 = vunpack.c.l.b16 %v583
    %v652 = vunpack.c.l.b16 %v584
    %v653 = vunpack.c.l.b16 %v585
    %v654 = vunpack.c.l.b16 %v586
    %v655 = vpack.c.b16 %v624, %v623
    %v656 = vpack.c.b16 %v626, %v625
    %v657 = vpack.c.b16 %v628, %v627
    %v658 = vpack.c.b16 %v630, %v629
    %v659 = vpack.c.b16 %v632, %v631
    %v660 = vpack.c.b16 %v634, %v633
    %v661 = vpack.c.b16 %v636, %v635
    %v662 = vpack.c.b16 %v638, %v637
    %v663 = vpack.c.b16 %v640, %v639
    %v664 = vpack.c.b16 %v642, %v641
    %v665 = vpack.c.b16 %v644, %v643
    %v666 = vpack.c.b16 %v646, %v645
    %v667 = vpack.c.b16 %v648, %v647
    %v668 = vpack.c.b16 %v650, %v649
    %v669 = vpack.c.b16 %v652, %v651
    %v670 = vpack.c.b16 %v654, %v653
    %687 = vmatpush.bf16.msra.mxu0 %v662
    %688 = vmatpush.bf16.msra.mxu0 %v661
    %689 = vmatpush.bf16.msra.mxu0 %v660
    %690 = vmatpush.bf16.msra.mxu0 %v659
    %691 = vmatpush.bf16.msra.mxu0 %v658
    %692 = vmatpush.bf16.msra.mxu0 %v657
    %693 = vmatpush.bf16.msra.mxu0 %v656
    %694 = vmatpush.bf16.msra.mxu0 %v655
    %695 = vmatmul.bf16.gmra.mxu0 %v553
    %v696 = vpop.f32.mrf.mxu0
    %v697 = vadd.f32 %v589, %v696
    %v698 = vpop.f32.mrf.mxu0
    %699 = vdwg.mxu0
    %700 = vmatpush.bf16.msra.mxu0 %v670
    %701 = vmatpush.bf16.msra.mxu0 %v669
    %702 = vmatpush.bf16.msra.mxu0 %v668
    %703 = vmatpush.bf16.msra.mxu0 %v667
    %704 = vmatpush.bf16.msra.mxu0 %v666
    %705 = vmatpush.bf16.msra.mxu0 %v665
    %706 = vmatpush.bf16.msra.mxu0 %v664
    %707 = vmatpush.bf16.msra.mxu0 %v663
    %708 = vmatmul.bf16.gmra.mxu0 %v554
    %v709 = vpop.f32.mrf.mxu0
    %v710 = vadd.f32 %v697, %v709
    %v711 = vpop.f32.mrf.mxu0
    %712 = vdwg.mxu0
    %v713 = vmax.f32 %v710, 0.0
    %v714 = vpack.c.bf16 %v713, %v713
    %v715 = vld [vmem:[#allocation10] sm:$0xff]
    %v716 = vld [vmem:[#allocation10 + $0x8] sm:$0xff]
    %v717 = vld [vmem:[#allocation10 + $0x10] sm:$0xff]
    %v718 = vld [vmem:[#allocation10 + $0x18] sm:$0xff]
    %v719 = vld [vmem:[#allocation10 + $0x20] sm:$0xff]
    %v720 = vld [vmem:[#allocation10 + $0x28] sm:$0xff]
    %v721 = vld [vmem:[#allocation10 + $0x30] sm:$0xff]
    %v722 = vld [vmem:[#allocation10 + $0x38] sm:$0xff]
    %v723 = vld [vmem:[#allocation10 + $0x40] sm:$0xff]
    %v724 = vld [vmem:[#allocation10 + $0x48] sm:$0xff]
    %v725 = vld [vmem:[#allocation10 + $0x50] sm:$0xff]
    %v726 = vld [vmem:[#allocation10 + $0x58] sm:$0xff]
    %v727 = vld [vmem:[#allocation10 + $0x60] sm:$0xff]
    %v728 = vld [vmem:[#allocation10 + $0x68] sm:$0xff]
    %v729 = vld [vmem:[#allocation10 + $0x70] sm:$0xff]
    %v730 = vld [vmem:[#allocation10 + $0x78] sm:$0xff]
    %v731 = vld [vmem:[%s6] sm:$0x3]
    %v733 = vperm.slane %v731, 0
    %v734 = vperm.slane %v731, 1
    %v753 = vunpack.c.l.b16 %v715
    %v754 = vunpack.c.h.b16 %v715
    %v755 = vunpack.c.l.b16 %v716
    %v756 = vunpack.c.h.b16 %v716
    %v757 = vunpack.c.l.b16 %v717
    %v758 = vunpack.c.h.b16 %v717
    %v759 = vunpack.c.l.b16 %v718
    %v760 = vunpack.c.h.b16 %v718
    %v761 = vunpack.c.l.b16 %v719
    %v762 = vunpack.c.h.b16 %v719
    %v763 = vunpack.c.l.b16 %v720
    %v764 = vunpack.c.h.b16 %v720
    %v765 = vunpack.c.l.b16 %v721
    %v766 = vunpack.c.h.b16 %v721
    %v767 = vunpack.c.l.b16 %v722
    %v768 = vunpack.c.h.b16 %v722
    %v769 = vunpack.c.l.b16 %v723
    %v770 = vunpack.c.h.b16 %v723
    %v771 = vunpack.c.l.b16 %v724
    %v772 = vunpack.c.h.b16 %v724
    %v773 = vunpack.c.l.b16 %v725
    %v774 = vunpack.c.h.b16 %v725
    %v775 = vunpack.c.l.b16 %v726
    %v776 = vunpack.c.h.b16 %v726
    %v777 = vunpack.c.l.b16 %v727
    %v778 = vunpack.c.h.b16 %v727
    %v779 = vunpack.c.l.b16 %v728
    %v780 = vunpack.c.h.b16 %v728
    %v781 = vunpack.c.l.b16 %v729
    %v782 = vunpack.c.h.b16 %v729
    %v783 = vunpack.c.l.b16 %v730
    %v784 = vunpack.c.h.b16 %v730
    %v785 = vpack.c.b16 %v755, %v753
    %v786 = vpack.c.b16 %v756, %v754
    %v787 = vpack.c.b16 %v759, %v757
    %v788 = vpack.c.b16 %v760, %v758
    %v789 = vpack.c.b16 %v763, %v761
    %v790 = vpack.c.b16 %v764, %v762
    %v791 = vpack.c.b16 %v767, %v765
    %v792 = vpack.c.b16 %v768, %v766
    %v793 = vpack.c.b16 %v771, %v769
    %v794 = vpack.c.b16 %v772, %v770
    %v795 = vpack.c.b16 %v775, %v773
    %v796 = vpack.c.b16 %v776, %v774
    %v797 = vpack.c.b16 %v779, %v777
    %v798 = vpack.c.b16 %v780, %v778
    %v799 = vpack.c.b16 %v783, %v781
    %v800 = vpack.c.b16 %v784, %v782
    %817 = vmatpush.bf16.msra.mxu0 %v799
    %818 = vmatpush.bf16.msra.mxu0 %v797
    %819 = vmatpush.bf16.msra.mxu0 %v795
    %820 = vmatpush.bf16.msra.mxu0 %v793
    %821 = vmatpush.bf16.msra.mxu0 %v791
    %822 = vmatpush.bf16.msra.mxu0 %v789
    %823 = vmatpush.bf16.msra.mxu0 %v787
    %824 = vmatpush.bf16.msra.mxu0 %v785
    %825 = vmatmul.bf16.gmra.mxu0 %v714
    %v826 = vpop.f32.mrf.mxu0
    %v827 = vadd.f32 %v733, %v826
    %v828 = vpop.f32.mrf.mxu0
    %829 = vdwg.mxu0
    %830 = vmatpush.bf16.msra.mxu0 %v800
    %831 = vmatpush.bf16.msra.mxu0 %v798
    %832 = vmatpush.bf16.msra.mxu0 %v796
    %833 = vmatpush.bf16.msra.mxu0 %v794
    %834 = vmatpush.bf16.msra.mxu0 %v792
    %835 = vmatpush.bf16.msra.mxu0 %v790
    %836 = vmatpush.bf16.msra.mxu0 %v788
    %837 = vmatpush.bf16.msra.mxu0 %v786
    %838 = vmatmul.bf16.gmra.mxu0 %v714
    %v839 = vpop.f32.mrf.mxu0
    %v840 = vadd.f32 %v734, %v839
    %v841 = vpop.f32.mrf.mxu0
    %842 = vdwg.mxu0
    %v843 = vmax.f32 %v840, 0.0
    %v844 = vpack.c.bf16 %v843, %v843
    %v845 = vld [vmem:[#allocation11] sm:$0xf]
    %v846 = vld [vmem:[#allocation11 + $0x4] sm:$0xf]
    %v847 = vld [vmem:[#allocation11 + $0x8] sm:$0xf]
    %v848 = vld [vmem:[#allocation11 + $0xc] sm:$0xf]
    %v849 = vld [vmem:[#allocation11 + $0x10] sm:$0xf]
    %v850 = vld [vmem:[#allocation11 + $0x14] sm:$0xf]
    %v851 = vld [vmem:[#allocation11 + $0x18] sm:$0xf]
    %v852 = vld [vmem:[#allocation11 + $0x1c] sm:$0xf]
    %v853 = vld [vmem:[#allocation11 + $0x20] sm:$0xf]
    %v854 = vld [vmem:[#allocation11 + $0x24] sm:$0xf]
    %v855 = vld [vmem:[#allocation11 + $0x28] sm:$0xf]
    %v856 = vld [vmem:[#allocation11 + $0x2c] sm:$0xf]
    %v857 = vld [vmem:[#allocation11 + $0x30] sm:$0xf]
    %v858 = vld [vmem:[#allocation11 + $0x34] sm:$0xf]
    %v859 = vld [vmem:[#allocation11 + $0x38] sm:$0xf]
    %v860 = vld [vmem:[#allocation11 + $0x3c] sm:$0xf]
    %v861 = vld [vmem:[%s8] sm:$0x1]
    %v863 = vperm.slane %v861, 0
    %v881 = vunpack.c.l.b16 %v845
    %v882 = vunpack.c.l.b16 %v846
    %v883 = vunpack.c.l.b16 %v847
    %v884 = vunpack.c.l.b16 %v848
    %v885 = vunpack.c.l.b16 %v849
    %v886 = vunpack.c.l.b16 %v850
    %v887 = vunpack.c.l.b16 %v851
    %v888 = vunpack.c.l.b16 %v852
    %v889 = vunpack.c.l.b16 %v853
    %v890 = vunpack.c.l.b16 %v854
    %v891 = vunpack.c.l.b16 %v855
    %v892 = vunpack.c.l.b16 %v856
    %v893 = vunpack.c.l.b16 %v857
    %v894 = vunpack.c.l.b16 %v858
    %v895 = vunpack.c.l.b16 %v859
    %v896 = vunpack.c.l.b16 %v860
    %v897 = vpack.c.b16 %v882, %v881
    %v898 = vpack.c.b16 %v884, %v883
    %v899 = vpack.c.b16 %v886, %v885
    %v900 = vpack.c.b16 %v888, %v887
    %v901 = vpack.c.b16 %v890, %v889
    %v902 = vpack.c.b16 %v892, %v891
    %v903 = vpack.c.b16 %v894, %v893
    %v904 = vpack.c.b16 %v896, %v895
    %913 = vmatpush.bf16.msra.mxu0 %v904
    %914 = vmatpush.bf16.msra.mxu0 %v903
    %915 = vmatpush.bf16.msra.mxu0 %v902
    %916 = vmatpush.bf16.msra.mxu0 %v901
    %917 = vmatpush.bf16.msra.mxu0 %v900
    %918 = vmatpush.bf16.msra.mxu0 %v899
    %919 = vmatpush.bf16.msra.mxu0 %v898
    %920 = vmatpush.bf16.msra.mxu0 %v897
    %921 = vmatmul.bf16.gmra.mxu0 %v844
    %v922 = vpop.f32.mrf.mxu0
    %v923 = vadd.f32 %v863, %v922
    %v924 = vpop.f32.mrf.mxu0
    %925 = vdwg.mxu0
    %v926 = vsub.f32 0.0, %v923
    %v927 = vmul.f32 %v926, 1.442695
    %v928 = vpow.pop %v927
    %v929 = vadd.f32 %v928, 1.0
    %v930 = vrcp.pop %v929
    %v931 = vmul.f32 %v929, %v930
    %v932 = vsub.f32 1.0, %v931
    %v933 = vmul.f32 %v930, %v932
    %v934 = vadd.f32 %v930, %v933
    %vm935 = vweird.f32 %v929
    %vm936 = vweird.f32 %v930
    %vm937 = vmor %vm935, %vm936
    %v938 = vsel %vm937, %v930, %v934
    %v939 = vand.u32 2147483647, %v929
    %vm940 = vcmp.eq.f32.partialorder %v939, 8.507059e+37
    %v941 = vand.u32 %v929, 2147483648
    %v942 = vor.u32 1.1754944e-38, %v941
    %v943 = vsel %vm940, %v942, %v938
    %v944 = vmul.f32 1.0, %v943
    %v945 = vlaneseq
    %v946 = vand.u32 %v945, 127
    %vm947 = vcmp.eq.s32.totalorder %v946, 20
    %v948 = vsel %vm947, %v944, %v827
    %949 = vst [vmem:[#allocation13] sm:$0xff] %v948
    %v950 = vlaneseq
    %v951 = vshrl.u32 %v950, 7
    %s952 = smul.u32 0, 8
    %v953 = vstv %s952
    %v954 = vadd.s32 %v951, %v953
    %vm955 = vcmp.lt.s32.totalorder %v954, 8
    %v956 = vsel %vm955, %v827, -1e+30
    %v957 = vrot.slane %v956, 4
    %v958 = vmax.f32 %v956, %v957
    %v959 = vrot.slane %v958, 2
    %v960 = vmax.f32 %v958, %v959
    %v961 = vrot.slane %v960, 1
    %v962 = vmax.f32 %v960, %v961
    %963 = vst [vmem:[#allocation14] sm:$0x1] %v962
    %v964 = vsub.f32 %v956, %v962
    %v965 = vmul.f32 %v964, 1.442695
    %v966 = vpow.pop %v965
    %v967 = vrot.slane %v966, 4
    %v968 = vadd.f32 %v966, %v967
    %v969 = vrot.slane %v968, 2
    %v970 = vadd.f32 %v968, %v969
    %v971 = vrot.slane %v970, 1
    %v972 = vadd.f32 %v970, %v971
    %973 = vst [vmem:[#allocation16] sm:$0x1] %v972
    // Predicated region
    $region62: #{tpu_custom_call.1} parent=1 // pred_check
      _
    $region63: #{tpu_custom_call.1} parent=1 // pred_check_branch
      %975 = sbr.rel (0) target = $region65
    $region64: #{tpu_custom_call.1} parent=1 // pred_region
      %977 = vsyncadd [#allocation4], 0
      %s979 = sshll.u32 [#allocation13], 4
      %s980 = int_to_ptr.vmem [resolvable:$true] %s979
      %s981 = sshll.u32 %s9, 4
      %s982 = int_to_ptr.hbm [resolvable:$true] %s981
      %984 = dma.vmem_to_hbm [thread:$0]  %s980, 128, %s982, [#allocation4]
    $region65: #{tpu_custom_call.1} parent=1 // pred_fallthru
      _
    // Predicated region
    $region66: #{tpu_custom_call.1} parent=1 // pred_check
      _
    $region67: #{tpu_custom_call.1} parent=1 // pred_check_branch
      %986 = sbr.rel (0) target = $region69
    $region68: #{tpu_custom_call.1} parent=1 // pred_region
      %988 = vsyncadd [#allocation15], 0
      %s990 = sshll.u32 [#allocation14], 4
      %s991 = int_to_ptr.vmem [resolvable:$true] %s990
      %s992 = sshll.u32 %s10, 4
      %s993 = int_to_ptr.hbm [resolvable:$true] %s992
      %995 = dma.vmem_to_hbm [thread:$0]  %s991, 16, %s993, [#allocation15]
    $region69: #{tpu_custom_call.1} parent=1 // pred_fallthru
      _
    // Predicated region
    $region70: #{tpu_custom_call.1} parent=1 // pred_check
      _
    $region71: #{tpu_custom_call.1} parent=1 // pred_check_branch
      %997 = sbr.rel (0) target = $region73
    $region72: #{tpu_custom_call.1} parent=1 // pred_region
      %999 = vsyncadd [#allocation15], 0
      %s1001 = sshll.u32 [#allocation16], 4
      %s1002 = int_to_ptr.vmem [resolvable:$true] %s1001
      %s1003 = sshll.u32 %s11, 4
      %s1004 = int_to_ptr.hbm [resolvable:$true] %s1003
      %1006 = dma.vmem_to_hbm [thread:$0]  %s1002, 16, %s1004, [#allocation15]
    $region73: #{tpu_custom_call.1} parent=1 // pred_fallthru
      _
    // Predicated region
    $region74: #{tpu_custom_call.1} parent=1 // pred_check
      _
    $region75: #{tpu_custom_call.1} parent=1 // pred_check_branch
      %1008 = sbr.rel (0) target = $region77
    $region76: #{tpu_custom_call.1} parent=1 // pred_region
      %1010 = dma.done [#allocation4], 128
    $region77: #{tpu_custom_call.1} parent=1 // pred_fallthru
      _
    // Predicated region
    $region78: #{tpu_custom_call.1} parent=1 // pred_check
      _
    $region79: #{tpu_custom_call.1} parent=1 // pred_check_branch
      %1012 = sbr.rel (0) target = $region81
    $region80: #{tpu_custom_call.1} parent=1 // pred_region
      %1014 = dma.done [#allocation15], 16
    $region81: #{tpu_custom_call.1} parent=1 // pred_fallthru
      _
    // Predicated region
    $region82: #{tpu_custom_call.1} parent=1 // pred_check
      _
    $region83: #{tpu_custom_call.1} parent=1 // pred_check_branch
      %1016 = sbr.rel (0) target = $region85
    $region84: #{tpu_custom_call.1} parent=1 // pred_region
      %1018 = dma.done [#allocation15], 16
    $region85: #{tpu_custom_call.1} parent=1 // pred_fallthru
      _
    %1019 = vsyncpa [#allocation3], 1
    %1020 = vsyncpa [#allocation6], 1
    %1021 = vsyncpa [#allocation9], 1
    %1022 = vsyncpa [#allocation12], 1
    %1023 = vsyncpa [#allocation4], 1
    %1024 = vsyncpa [#allocation15], 1

</llo_original>
